<compile_context>
chip_gen: v6e
topology: v6e:2x2x1
jax: 0.10.0
libtpu: 0.0.40
codegen_flags: <defaults>
</compile_context>

<pallas_src>
import math

import jax
import jax.numpy as jnp
from jax.experimental import pallas as pl
from jax.experimental.pallas import tpu as pltpu


def _vmem_limit(budget_bytes, *, headroom=1.5, floor=16 << 20, ceil=64 << 20):
    """Explicit scoped-VMEM limit sized from the actual budget, with headroom.
    Capped at 64 MiB so the same setting is safe on v7x (64 MiB physical per TC)."""
    return int(min(max(int(budget_bytes * headroom) + (4 << 20), floor), ceil))


# ---------------------------------------------------------------------------
# Kernel 1: fused QKV input projection — one lane-dense (rows, E) x (E, 3E) matmul.
# Computed ONCE per token (hoisted out of the flash loop).
# ---------------------------------------------------------------------------
def _qkv_proj_kernel(x_ref, w_ref, b_ref, o_ref):
    x = x_ref[...].astype(jnp.bfloat16)
    acc = jnp.dot(x, w_ref[...], preferred_element_type=jnp.float32)   # f32 accumulate
    o_ref[...] = (acc + b_ref[...]).astype(o_ref.dtype)                # bf16 out, lane-dense


# ---------------------------------------------------------------------------
# Kernel 2: flash attention over precomputed per-head Q/K/V + fused output projection.
# Grid = (batch, q_tiles, kv_tiles); online softmax over the KV (reduction) axis.
# ---------------------------------------------------------------------------
def _flash_attn_kernel(q_ref, k_ref, v_ref, wo_ref, bo_ref, o_ref,
                       m_sc, l_sc, acc_sc, attn_sc):
    ki = pl.program_id(2)
    nk = pl.num_programs(2)
    H, TQ, D = acc_sc.shape
    bf16 = jnp.bfloat16

    @pl.when(ki == 0)
    def _init():
        # NOTE: -inf init assumes at least one finite score per row; add a finite floor
        # before introducing causal/padding masks (review correctness note).
        m_sc[...] = jnp.full(m_sc.shape, -jnp.inf, jnp.float32)
        l_sc[...] = jnp.zeros(l_sc.shape, jnp.float32)
        acc_sc[...] = jnp.zeros(acc_sc.shape, jnp.float32)

    q = q_ref[0]   # (H, TQ, D) bf16, 1/sqrt(D) already folded into the projection
    k = k_ref[0]   # (H, TK, D) bf16
    v = v_ref[0]   # (H, TK, D) bf16

    # Scores: batched over heads, contracting the shared last dim (no transpose), f32.
    s = jnp.einsum("hqd,hkd->hqk", q, k, preferred_element_type=jnp.float32)

    # Online (flash) softmax accumulation — all f32 (no bf16 VPU/EUP on v5e).
    m_prev = m_sc[...]
    m_new = jnp.maximum(m_prev, jnp.max(s, axis=-1, keepdims=True))
    alpha = jnp.exp(m_prev - m_new)
    p = jnp.exp(s - m_new)
    l_sc[...] = alpha * l_sc[...] + jnp.sum(p, axis=-1, keepdims=True)
    acc_sc[...] = alpha * acc_sc[...] + jnp.einsum(
        "hqk,hkd->hqd", p.astype(bf16), v, preferred_element_type=jnp.float32)
    m_sc[...] = m_new

    @pl.when(ki == nk - 1)
    def _finalize():
        inv_l = pl.reciprocal(l_sc[...], approx=True)          # EUP, not a VALU divide
        attn = acc_sc[...] * inv_l                              # (H, TQ, D) f32
        # Pack heads into a lane-dense (TQ, E) bf16 slab (static per-head slices), then do
        # ONE deep (TQ, E) x (E, E) output-projection matmul — no (H, TQ, E) intermediate,
        # no per-head shallow matmuls, and the final store is lane-dense.
        for h in range(H):
            attn_sc[:, h * D:(h + 1) * D] = attn[h].astype(bf16)
        out = jnp.dot(attn_sc[...], wo_ref[...], preferred_element_type=jnp.float32)
        o_ref[0] = (out + bo_ref[...]).astype(o_ref.dtype)


def multihead_self_attention(x, in_proj_weight, in_proj_bias,
                             out_proj_weight, out_proj_bias,
                             *, num_heads, q_tile=None, kv_tile=None, row_tile=256):
    """x: (B, L, E) f32. Weights in PyTorch nn.MultiheadAttention layout:
       in_proj_weight (3E, E), in_proj_bias (3E,), out_proj_weight (E, E), out_proj_bias (E,)."""
    B, L, E = x.shape
    H = num_heads
    assert E % H == 0
    D = E // H
    bf16, f32 = jnp.bfloat16, jnp.float32

    # Per-generation tile defaults: 256 for wide (2x256) MXUs (v6e/v7x), 128 for v5e.
    if q_tile is None or kv_tile is None:
        kind = jax.devices()[0].device_kind.lower()
        wide_mxu = ("v6" in kind) or ("v7" in kind)
        if q_tile is None:
            q_tile = 256 if wide_mxu else 128
        if kv_tile is None:
            kv_tile = 256 if wide_mxu else 128
    TQ = min(q_tile, L)
    TK = min(kv_tile, L)
    assert L % TQ == 0 and L % TK == 0, "demo assumes L divisible by tile sizes"
    nq, nk = L // TQ, L // TK
    scale = 1.0 / math.sqrt(D)

    # ---- One-time weight plumbing (wrapper side, never inside the kernels) ----
    col_scale = jnp.concatenate([jnp.full((E,), scale, f32), jnp.ones((2 * E,), f32)])
    w_in = (in_proj_weight.T * col_scale[None, :]).astype(bf16)          # (E, 3E), Q-scale folded
    b_in = (in_proj_bias.astype(f32) * col_scale).reshape(1, 3 * E)      # (1, 3E) f32
    w_o = out_proj_weight.T.astype(bf16)                                 # (E, E)
    b_o = out_proj_bias.astype(f32).reshape(1, E)                        # (1, E)

    # ---- Stage 1: hoisted QKV projection (once per token, not per q-tile) ----
    BL = B * L
    TR = min(row_tile, BL)
    x2d = x.reshape(BL, E)
    proj_budget = (2 * TR * E * 4                      # x tile (double-buffered)
                   + E * 3 * E * 2 + 3 * E * 4         # w (single-buffered) + b
                   + 2 * TR * 3 * E * 2)               # out tile (double-buffered)
    qkv = pl.pallas_call(
        _qkv_proj_kernel,
        out_shape=jax.ShapeDtypeStruct((BL, 3 * E), bf16),
        grid=(pl.cdiv(BL, TR),),
        in_specs=[
            pl.BlockSpec((TR, E), lambda r: (r, 0)),
            pl.BlockSpec((E, 3 * E), lambda r: (0, 0), pipeline_mode=pl.Buffered(1)),
            pl.BlockSpec((1, 3 * E), lambda r: (0, 0), pipeline_mode=pl.Buffered(1)),
        ],
        out_specs=pl.BlockSpec((TR, 3 * E), lambda r: (r, 0)),
        compiler_params=pltpu.CompilerParams(
            dimension_semantics=("parallel",),
            vmem_limit_bytes=_vmem_limit(proj_budget)),
    )(x2d, w_in, b_in)

    # Layout plumbing (XLA, one-time): split into per-head (B, H, L, D) bf16 slabs.
    qkv = qkv.reshape(B, L, 3, H, D)
    q = qkv[:, :, 0].transpose(0, 2, 1, 3)
    k = qkv[:, :, 1].transpose(0, 2, 1, 3)
    v = qkv[:, :, 2].transpose(0, 2, 1, 3)

    # ---- Stage 2: flash attention + fused output projection ----
    flash_budget = (2 * H * TQ * D * 2                 # q tiles
                    + 2 * 2 * H * TK * D * 2           # k, v tiles
                    + 2 * TQ * E * 4                   # out tiles
                    + E * E * 2 + E * 4                # w_o (single-buffered) + b_o
                    + 2 * H * TQ * 4                   # m, l scratch
                    + H * TQ * D * 4                   # acc scratch
                    + TQ * E * 2)                      # packed attn scratch
    out = pl.pallas_call(
        _flash_attn_kernel,
        out_shape=jax.ShapeDtypeStruct((B, L, E), jnp.float32),
        grid=(B, nq, nk),
        in_specs=[
            pl.BlockSpec((1, H, TQ, D), lambda b, qi, ki: (b, 0, qi, 0)),   # Q tile
            pl.BlockSpec((1, H, TK, D), lambda b, qi, ki: (b, 0, ki, 0)),   # K tile
            pl.BlockSpec((1, H, TK, D), lambda b, qi, ki: (b, 0, ki, 0)),   # V tile
            pl.BlockSpec((E, E), lambda b, qi, ki: (0, 0), pipeline_mode=pl.Buffered(1)),  # w_o
            pl.BlockSpec((1, E), lambda b, qi, ki: (0, 0), pipeline_mode=pl.Buffered(1)),  # b_o
        ],
        out_specs=pl.BlockSpec((1, TQ, E), lambda b, qi, ki: (b, qi, 0)),
        scratch_shapes=[
            pltpu.VMEM((H, TQ, 1), jnp.float32),   # running max
            pltpu.VMEM((H, TQ, 1), jnp.float32),   # running denominator
            pltpu.VMEM((H, TQ, D), jnp.float32),   # output accumulator
            pltpu.VMEM((TQ, E), bf16),             # packed attn for the out-proj matmul
        ],
        # B and q-tile axes are parallel (megacore sharding); KV axis is the reduction.
        compiler_params=pltpu.CompilerParams(
            dimension_semantics=("parallel", "parallel", "arbitrary"),
            vmem_limit_bytes=_vmem_limit(flash_budget)),
    )(q, k, v, w_o, b_o)
    return out


def _reference(x, in_w, in_b, out_w, out_b, num_heads):
    """Pure-JAX f32 reference matching nn.MultiheadAttention(q=k=v=x, batch_first=True)."""
    B, L, E = x.shape
    D = E // num_heads
    qkv = x @ in_w.T + in_b
    q, k, v = qkv[..., :E], qkv[..., E:2 * E], qkv[..., 2 * E:]

    def split(t):
        return t.reshape(B, L, num_heads, D).transpose(0, 2, 1, 3)

    q, k, v = split(q) / math.sqrt(D), split(k), split(v)
    s = jnp.einsum("bhqd,bhkd->bhqk", q, k)
    p = jax.nn.softmax(s, axis=-1)
    o = jnp.einsum("bhqk,bhkd->bhqd", p, v).transpose(0, 2, 1, 3).reshape(B, L, E)
    return o @ out_w.T + out_b


if __name__ == "__main__":
    B, L = 2, 8
    embed_size, heads = 32, 4

    key = jax.random.PRNGKey(0)
    kx, k1, k2, k3, k4 = jax.random.split(key, 5)

    x = jax.random.normal(kx, (B, L, embed_size), dtype=jnp.float32)
    # Synthetic parameters in PyTorch nn.MultiheadAttention shapes.
    in_proj_weight = jax.random.normal(k1, (3 * embed_size, embed_size), jnp.float32) * 0.1
    in_proj_bias = jax.random.normal(k2, (3 * embed_size,), jnp.float32) * 0.1
    out_proj_weight = jax.random.normal(k3, (embed_size, embed_size), jnp.float32) * 0.1
    out_proj_bias = jax.random.normal(k4, (embed_size,), jnp.float32) * 0.1

    out = multihead_self_attention(x, in_proj_weight, in_proj_bias,
                                   out_proj_weight, out_proj_bias, num_heads=heads)
    out = jax.block_until_ready(out)

    ref = _reference(x, in_proj_weight, in_proj_bias, out_proj_weight, out_proj_bias, heads)
    assert out.shape == (B, L, embed_size)
    max_err = float(jnp.max(jnp.abs(out - ref)))
    # bf16 MXU operands -> relaxed tolerance vs f32 reference.
    assert jnp.allclose(out, ref, atol=3e-2, rtol=3e-2), f"mismatch vs reference (max abs err {max_err})"

    print("KERNEL_OK")
</pallas_src>

<mosaic_0001>
module attributes {stable_mosaic.version = 11 : i64} {
  func.func @_qkv_proj_kernel(%arg0: i32, %arg1: memref<16x32xf32, #tpu.memory_space<vmem>>, %arg2: memref<32x96xbf16, #tpu.memory_space<vmem>>, %arg3: memref<1x96xf32, #tpu.memory_space<vmem>>, %arg4: memref<16x96xbf16, #tpu.memory_space<vmem>>) attributes {dimension_semantics = [#tpu.dimension_semantics<parallel>], iteration_bounds = array<i64: 1>, scalar_prefetch = 0 : i64, scratch_operands = 0 : i64, tpu.core_type = #tpu.core_type<tc>, window_params = [{transform_indices = @transform_0, window_bounds = array<i64: 16, 32>}, {pipeline_mode = #tpu.pipeline_mode<synchronous>, transform_indices = @transform_1, window_bounds = array<i64: 32, 96>}, {pipeline_mode = #tpu.pipeline_mode<synchronous>, transform_indices = @transform_2, window_bounds = array<i64: 1, 96>}, {transform_indices = @transform_3, window_bounds = array<i64: 16, 96>}]} {
    %c0 = arith.constant 0 : index
    %c0_0 = arith.constant 0 : index
    %0 = vector.load %arg1[%c0, %c0_0] : memref<16x32xf32, #tpu.memory_space<vmem>>, vector<16x32xf32>
    %1 = arith.truncf %0 : vector<16x32xf32> to vector<16x32xbf16>
    %c0_1 = arith.constant 0 : index
    %c0_2 = arith.constant 0 : index
    %2 = vector.load %arg2[%c0_1, %c0_2] : memref<32x96xbf16, #tpu.memory_space<vmem>>, vector<32x96xbf16>
    %cst = arith.constant dense<0.000000e+00> : vector<16x96xf32>
    %3 = tpu.matmul %1, %2, %cst {dimension_numbers = #tpu.dot_dimension_numbers<[1], [0], [0], [1], [0, 0, 1, 1], [], []>} : vector<16x32xbf16>, vector<32x96xbf16>, vector<16x96xf32> -> vector<16x96xf32>
    %c0_3 = arith.constant 0 : index
    %c0_4 = arith.constant 0 : index
    %4 = vector.load %arg3[%c0_3, %c0_4] : memref<1x96xf32, #tpu.memory_space<vmem>>, vector<1x96xf32>
    %5 = vector.broadcast %4 : vector<1x96xf32> to vector<16x96xf32>
    %6 = arith.addf %3, %5 : vector<16x96xf32>
    %7 = arith.truncf %6 : vector<16x96xf32> to vector<16x96xbf16>
    %c0_5 = arith.constant 0 : index
    %c0_6 = arith.constant 0 : index
    %8 = vector.load %arg4[%c0_5, %c0_6] : memref<16x96xbf16, #tpu.memory_space<vmem>>, vector<16x96xbf16>
    tpu.vector_store %arg4[%c0_5, %c0_6], %7 {strides = array<i32>} : memref<16x96xbf16, #tpu.memory_space<vmem>>, vector<16x96xbf16>,
    return
  }
  func.func @transform_0(%arg0: i32) -> (i32, i32) {
    %c0_i32 = arith.constant 0 : i32
    %c0_i32_0 = arith.constant 0 : i32
    return %arg0, %c0_i32 : i32, i32
  }
  func.func @transform_1(%arg0: i32) -> (i32, i32) {
    %c0_i32 = arith.constant 0 : i32
    %c0_i32_0 = arith.constant 0 : i32
    %c0_i32_1 = arith.constant 0 : i32
    return %c0_i32, %c0_i32_0 : i32, i32
  }
  func.func @transform_2(%arg0: i32) -> (i32, i32) {
    %c0_i32 = arith.constant 0 : i32
    %c0_i32_0 = arith.constant 0 : i32
    %c0_i32_1 = arith.constant 0 : i32
    return %c0_i32, %c0_i32_0 : i32, i32
  }
  func.func @transform_3(%arg0: i32) -> (i32, i32) {
    %c0_i32 = arith.constant 0 : i32
    %c0_i32_0 = arith.constant 0 : i32
    return %arg0, %c0_i32 : i32, i32
  }
}

</mosaic_0001>

<llo_original>
// kernel: tpu_custom_call.1
$region0: #{tpu_custom_call.1}
  #allocation0 [shape = 'u32[]', space=smem, size = 0x4, offset = 0x4, fixed_abs, tag = 'smem constant byte address 0x4 - core index']
  #allocation1 [shape = 'u32[144,128]{1,0:T(1,128)}', space=vmem, size = 0x12000, scoped, tag = 'internal scratch']
  %s0 = inlined_call_operand.hbm [shape: f32[16,32], index: 0, kind: input, shape index: {}]
  %s1 = inlined_call_operand.hbm [shape: bf16[32,96], index: 1, kind: input, shape index: {}]
  %s2 = inlined_call_operand.vmem [shape: f32[1,96], index: 2, kind: input, shape index: {}]
  %s3 = inlined_call_operand.hbm [shape: bf16[16,96], index: 3, kind: output, shape index: {}]
  %s4 = sld [smem:[#allocation0]]
  $region30: #{tpu_custom_call.1} parent=0
    _
  %s6 = ssub.s32 1, %s4
  %s7 = scalar_select 0, %s6, %s4
  $region1: #{tpu_custom_call.1} parent=0
    #allocation2 [shape = 'u8[8192]{0}', space=vmem, size = 0x2000, scoped, tag = 'input window, operand 0, single buffered']
    #allocation3 [shape = 's32[1]{0}', space=sflag, size = 0x4, scoped, tag = 'scoped memory for tpu_custom_call.1']
    #allocation4 [shape = 's32[1]{0}', space=sflag, size = 0x4, scoped, tag = 'scoped memory for tpu_custom_call.1']
    #allocation5 [shape = 'u8[8192]{0}', space=vmem, size = 0x2000, scoped, tag = 'input window, operand 1, single buffered']
    #allocation6 [shape = 's32[1]{0}', space=sflag, size = 0x4, scoped, tag = 'scoped memory for tpu_custom_call.1']
    #allocation7 [shape = 'u8[4096]{0}', space=vmem, size = 0x1000, scoped, tag = 'output window, operand 0, single buffered']
    %8 = vsyncpa [#allocation3], 0
    %9 = vsyncpa [#allocation6], 0
    %10 = vsyncpa [#allocation4], 0
    // Predicated region
    $region2: #{tpu_custom_call.1} parent=1 // pred_check
      _
    $region3: #{tpu_custom_call.1} parent=1 // pred_check_branch
      %12 = sbr.rel (0) target = $region5
    $region4: #{tpu_custom_call.1} parent=1 // pred_region
      %s14 = ssub.s32 256, 256
      %15 = vsyncadd [#allocation3], %s14
      %s16 = sshll.u32 [#allocation2], 4
      %s17 = int_to_ptr.vmem [resolvable:$true] %s16
      %22 = dma.hbm_to_vmem [thread:$0]  %s0, 256, %s17, [#allocation3], 128, 128, 8
    $region5: #{tpu_custom_call.1} parent=1 // pred_fallthru
      _
    // Predicated region
    $region6: #{tpu_custom_call.1} parent=1 // pred_check
      _
    $region7: #{tpu_custom_call.1} parent=1 // pred_check_branch
      %24 = sbr.rel (0) target = $region9
    $region8: #{tpu_custom_call.1} parent=1 // pred_region
      %s26 = ssub.s32 256, 256
      %27 = vsyncadd [#allocation6], %s26
      %s28 = sshll.u32 [#allocation5], 4
      %s29 = int_to_ptr.vmem [resolvable:$true] %s28
      %34 = dma.hbm_to_vmem [thread:$0]  %s1, 256, %s29, [#allocation6], 64, 64, 4
    $region9: #{tpu_custom_call.1} parent=1 // pred_fallthru
      _
    // Predicated region
    $region10: #{tpu_custom_call.1} parent=1 // pred_check
      _
    $region11: #{tpu_custom_call.1} parent=1 // pred_check_branch
      %36 = sbr.rel (0) target = $region13
    $region12: #{tpu_custom_call.1} parent=1 // pred_region
      _
    $region13: #{tpu_custom_call.1} parent=1 // pred_fallthru
      _
    // Predicated region
    $region14: #{tpu_custom_call.1} parent=1 // pred_check
      _
    $region15: #{tpu_custom_call.1} parent=1 // pred_check_branch
      %38 = sbr.rel (0) target = $region17
    $region16: #{tpu_custom_call.1} parent=1 // pred_region
      %39 = dma.done [#allocation3], 256
    $region17: #{tpu_custom_call.1} parent=1 // pred_fallthru
      _
    // Predicated region
    $region18: #{tpu_custom_call.1} parent=1 // pred_check
      _
    $region19: #{tpu_custom_call.1} parent=1 // pred_check_branch
      %41 = sbr.rel (0) target = $region21
    $region20: #{tpu_custom_call.1} parent=1 // pred_region
      %42 = dma.done [#allocation6], 256
    $region21: #{tpu_custom_call.1} parent=1 // pred_fallthru
      _
    %v44 = vld [vmem:[#allocation2] sm:$0xff]
    %v45 = vld [vmem:[#allocation2 + $0x8] sm:$0xff]
    %v46 = vpack.c.bf16 %v45, %v44
    %v47 = vld [vmem:[#allocation5] sm:$0xf]
    %v48 = vld [vmem:[#allocation5 + $0x4] sm:$0xf]
    %v49 = vld [vmem:[#allocation5 + $0x8] sm:$0xf]
    %v50 = vld [vmem:[#allocation5 + $0xc] sm:$0xf]
    %v51 = vld [vmem:[%s2] sm:$0x1]
    %v53 = vlaneseq
    %v54 = vshrl.u32 %v53, 7
    %v55 = vsub.s32 0, %v54
    %v56 = vrot.slane %v51, %v55
    %v62 = vunpack.c.l.b16 %v47
    %v63 = vunpack.c.l.b16 %v48
    %v64 = vunpack.c.l.b16 %v49
    %v65 = vunpack.c.l.b16 %v50
    %v66 = vpack.c.b16 %v63, %v62
    %v67 = vpack.c.b16 %v65, %v64
    %vm70 = vcmask 261120
    %v72 = vsel %vm70, %v46, 0
    %74 = vmatprep.subr.bf16.mxu0 0
    %75 = vmatpush1.bf16.msra.mxu0 0
    %76 = vmatprep.subr.bf16.mxu0 0
    %77 = vmatpush1.bf16.msra.mxu0 0
    %78 = vmatprep.subr.bf16.mxu0 0
    %79 = vmatpush1.bf16.msra.mxu0 0
    %80 = vmatprep.subr.bf16.mxu0 0
    %81 = vmatpush1.bf16.msra.mxu0 0
    %82 = vmatprep.subr.bf16.mxu0 0
    %83 = vmatpush1.bf16.msra.mxu0 0
    %84 = vmatprep.subr.bf16.mxu0 0
    %85 = vmatpush1.bf16.msra.mxu0 0
    %86 = vmatprep.subr.bf16.mxu0 0
    %87 = vmatpush1.bf16.msra.mxu0 %v67
    %88 = vmatprep.subr.bf16.mxu0 0
    %89 = vmatpush1.bf16.msra.mxu0 %v66
    %90 = vmatprep.subr.bf16.mxu0 0
    %91 = vmatpush2.bf16.msra.mxu0 0
    %92 = vmatprep.subr.bf16.mxu0 0
    %93 = vmatpush2.bf16.msra.mxu0 0
    %94 = vmatprep.subr.bf16.mxu0 0
    %95 = vmatpush2.bf16.msra.mxu0 0
    %96 = vmatprep.subr.bf16.mxu0 0
    %97 = vmatpush2.bf16.msra.mxu0 0
    %98 = vmatprep.subr.bf16.mxu0 0
    %99 = vmatpush2.bf16.msra.mxu0 0
    %100 = vmatprep.subr.bf16.mxu0 0
    %101 = vmatpush2.bf16.msra.mxu0 0
    %102 = vmatprep.subr.bf16.mxu0 0
    %103 = vmatpush2.bf16.msra.mxu0 0
    %104 = vmatprep.subr.bf16.mxu0 0
    %105 = vmatpush2.bf16.msra.mxu0 0
    %106 = vmatprep.mubr.bf16.mxu0 0
    %107 = vmatmul.mubr.bf16.gmra.mxu0 %v72
    %v108 = vpop.f32.mrf.mxu0
    %v109 = vadd.f32 %v56, %v108
    %v110 = vpop.f32.mrf.mxu0
    %v111 = vpop.f32.mrf.mxu0
    %v112 = vadd.f32 %v56, %v111
    %v113 = vpop.f32.mrf.mxu0
    %114 = vdwg.mxu0
    %v115 = vpack.c.bf16 %v112, %v109
    %v117 = vunpack.c.l.b16 %v115
    %v118 = vunpack.c.h.b16 %v115
    %v119 = vpack.c.b16 %v117, %v117
    %v120 = vpack.c.b16 %v118, %v118
    %vm123 = vcmask 781312
    %124 = vst.msk [vmem:[#allocation7] sm:$0xf] %vm123, %v119
    %125 = vst.msk [vmem:[#allocation7 + $0x4] sm:$0xf] %vm123, %v120
    // Predicated region
    $region22: #{tpu_custom_call.1} parent=1 // pred_check
      _
    $region23: #{tpu_custom_call.1} parent=1 // pred_check_branch
      %127 = sbr.rel (0) target = $region25
    $region24: #{tpu_custom_call.1} parent=1 // pred_region
      %s129 = ssub.s32 128, 128
      %130 = vsyncadd [#allocation4], %s129
      %s131 = sshll.u32 [#allocation7], 4
      %s132 = int_to_ptr.vmem [resolvable:$true] %s131
      %137 = dma.vmem_to_hbm [thread:$0]  %s132, 128, %s3, [#allocation4], 64, 64, 4
    $region25: #{tpu_custom_call.1} parent=1 // pred_fallthru
      _
    // Predicated region
    $region26: #{tpu_custom_call.1} parent=1 // pred_check
      _
    $region27: #{tpu_custom_call.1} parent=1 // pred_check_branch
      %139 = sbr.rel (0) target = $region29
    $region28: #{tpu_custom_call.1} parent=1 // pred_region
      %140 = dma.done [#allocation4], 128
    $region29: #{tpu_custom_call.1} parent=1 // pred_fallthru
      _
    %141 = vsyncpa [#allocation3], 1
    %142 = vsyncpa [#allocation6], 1
    %143 = vsyncpa [#allocation4], 1

</llo_original>
